<compile_context>
chip_gen: v6e
topology: v6e:2x2x1
jax: 0.10.0
libtpu: 0.0.40
codegen_flags: <defaults>
</compile_context>

<pallas_src>
import jax
import jax.numpy as jnp
from jax.experimental import pallas as pl
from jax.experimental.pallas import tpu as pltpu


def _multimodal_kernel(statics_ref, masks_ref,
                       wreg_ref, breg_ref,
                       w1_ref, b1_ref,
                       w2_ref, b2_ref,
                       w3_ref, b3_ref,
                       sc_ref, stc_ref, partial_ref):
    x = statics_ref[...]            # [TB, S]
    m = masks_ref[...]              # [TB, S]

    # StaticFeatureRegression: s_h = x @ Wr + b
    s_h = jnp.dot(x, wreg_ref[...], preferred_element_type=jnp.float32) + breg_ref[...]

    # masked imputation: m*x + (1-m)*s_h  ==  s_h + m*(x - s_h)
    s_c0 = s_h + m * (x - s_h)
    stc_ref[...] = s_c0.astype(stc_ref.dtype)

    # Per-tile partial sums of the imputation data loss; the divide and the
    # parameter-only diag-L1 penalty are finished in the wrapper.
    partial_ref[0, 0] = jnp.sum(jnp.abs(x - s_c0) * m)
    partial_ref[0, 1] = jnp.sum(m)

    # dense1 -> ReLU -> (dropout=id) -> dense2 -> ReLU -> (dropout=id) -> dense3 -> ReLU
    # TODO(synk): cast matmul operands to bfloat16 (keep f32 accumulation) once the batch
    # tile is >=128 on v6e/v7x for full-rate MXU; at these f32 test sizes it only hurts accuracy.
    h = jnp.dot(s_c0, w1_ref[...], preferred_element_type=jnp.float32) + b1_ref[...]
    h = jnp.maximum(h, 0.0)
    h = jnp.dot(h, w2_ref[...], preferred_element_type=jnp.float32) + b2_ref[...]
    h = jnp.maximum(h, 0.0)
    h = jnp.dot(h, w3_ref[...], preferred_element_type=jnp.float32) + b3_ref[...]
    h = jnp.maximum(h, 0.0)
    sc_ref[...] = h.astype(sc_ref.dtype)


def _round_up(x, m):
    return (x + m - 1) // m * m


def multimodal_forward(statics, masks, params, impute_weight, *, max_batch_tile=256):
    B, S = statics.shape
    H = params["w1"].shape[1]

    # Batch tile: multiple of 8 sublanes, capped; pad batch so it divides evenly.
    # Padded rows use mask=0 so they contribute nothing to the loss sums.
    TB = min(_round_up(B, 8), max_batch_tile)
    Bp = _round_up(B, TB)
    if Bp != B:
        pad = ((0, Bp - B), (0, 0))
        statics = jnp.pad(statics, pad)
        masks = jnp.pad(masks, pad)
    n_tiles = Bp // TB

    def batched(feat):
        return pl.BlockSpec((TB, feat), lambda i: (i, 0))

    def resident(shape):
        return pl.BlockSpec(shape, lambda i: (0, 0))

    s_c, s_tc, partials = pl.pallas_call(
        _multimodal_kernel,
        grid=(n_tiles,),
        in_specs=[
            batched(S),                 # statics
            batched(S),                 # masks
            resident((S, S)),           # wreg
            resident((1, S)),           # breg
            resident((S, H)),           # w1
            resident((1, H)),           # b1
            resident((H, H)),           # w2
            resident((1, H)),           # b2
            resident((H, H)),           # w3
            resident((1, H)),           # b3
        ],
        out_specs=(
            batched(H),                                            # s_c
            batched(S),                                            # s_tc
            pl.BlockSpec((1, 2), lambda i: (i, 0),
                         memory_space=pltpu.MemorySpace.SMEM),     # loss partials
        ),
        out_shape=(
            jax.ShapeDtypeStruct((Bp, H), jnp.float32),
            jax.ShapeDtypeStruct((Bp, S), jnp.float32),
            jax.ShapeDtypeStruct((n_tiles, 2), jnp.float32),
        ),
        compiler_params=pltpu.CompilerParams(
            dimension_semantics=("parallel",)),
    )(statics, masks,
      params["wreg"], params["breg"],
      params["w1"], params["b1"],
      params["w2"], params["b2"],
      params["w3"], params["b3"])

    # Finish the loss on the XLA side: tiny scalar reductions + parameter-only penalty.
    # (Faithful to the module: the |statics - s_c| * masks term is kept even though it is
    #  identically zero for strictly binary masks.)
    data_loss = jnp.sum(partials[:, 0]) / (jnp.sum(partials[:, 1]) + 1e-5)
    diag_l1 = jnp.sum(jnp.abs(jnp.diagonal(params["wreg"])))
    s_loss = data_loss + impute_weight * 0.1 * diag_l1

    return s_c[:B], s_tc[:B], s_loss


def _reference(statics, masks, params, impute_weight):
    s_h = statics @ params["wreg"] + params["breg"]
    s_c0 = masks * statics + (1 - masks) * s_h
    s_tc = s_c0
    loss = jnp.sum(jnp.abs(statics - s_c0) * masks) / (jnp.sum(masks) + 1e-5)
    loss = loss + impute_weight * 0.1 * jnp.sum(jnp.abs(jnp.diagonal(params["wreg"])))
    h = jax.nn.relu(s_c0 @ params["w1"] + params["b1"])
    h = jax.nn.relu(h @ params["w2"] + params["b2"])
    h = jax.nn.relu(h @ params["w3"] + params["b3"])
    return h, s_tc, loss


def init_params(key, static_size, rnn_hid_size):
    ks = jax.random.split(key, 8)

    def lin(k, fan_in, shape):
        bound = 1.0 / jnp.sqrt(fan_in)
        return jax.random.uniform(k, shape, jnp.float32, -bound, bound)

    return {
        "wreg": lin(ks[0], static_size, (static_size, static_size)),
        "breg": lin(ks[1], static_size, (1, static_size)),
        "w1":   lin(ks[2], static_size, (static_size, rnn_hid_size)),
        "b1":   lin(ks[3], static_size, (1, rnn_hid_size)),
        "w2":   lin(ks[4], rnn_hid_size, (rnn_hid_size, rnn_hid_size)),
        "b2":   lin(ks[5], rnn_hid_size, (1, rnn_hid_size)),
        "w3":   lin(ks[6], rnn_hid_size, (rnn_hid_size, rnn_hid_size)),
        "b3":   lin(ks[7], rnn_hid_size, (1, rnn_hid_size)),
    }


if __name__ == "__main__":
    B, STATIC_SIZE, RNN_HID = 8, 16, 32
    IMPUTE_WEIGHT = 0.3

    key = jax.random.PRNGKey(0)
    k_data, k_mask, k_param = jax.random.split(key, 3)

    statics = jax.random.normal(k_data, (B, STATIC_SIZE), jnp.float32)
    masks = (jax.random.uniform(k_mask, (B, STATIC_SIZE)) > 0.3).astype(jnp.float32)
    params = init_params(k_param, STATIC_SIZE, RNN_HID)

    s_c, s_tc, s_loss = multimodal_forward(statics, masks, params, IMPUTE_WEIGHT)
    jax.block_until_ready((s_c, s_tc, s_loss))

    r_c, r_tc, r_loss = _reference(statics, masks, params, IMPUTE_WEIGHT)
    assert jnp.allclose(s_c, r_c, atol=1e-4, rtol=1e-4)
    assert jnp.allclose(s_tc, r_tc, atol=1e-4, rtol=1e-4)
    assert jnp.allclose(s_loss, r_loss, atol=1e-4, rtol=1e-4)

    print("KERNEL_OK")
</pallas_src>

<mosaic_0001>
module attributes {stable_mosaic.version = 11 : i64} {
  func.func @_multimodal_kernel(%arg0: i32, %arg1: memref<8x16xf32, #tpu.memory_space<vmem>>, %arg2: memref<8x16xf32, #tpu.memory_space<vmem>>, %arg3: memref<16x16xf32, #tpu.memory_space<vmem>>, %arg4: memref<1x16xf32, #tpu.memory_space<vmem>>, %arg5: memref<16x32xf32, #tpu.memory_space<vmem>>, %arg6: memref<1x32xf32, #tpu.memory_space<vmem>>, %arg7: memref<32x32xf32, #tpu.memory_space<vmem>>, %arg8: memref<1x32xf32, #tpu.memory_space<vmem>>, %arg9: memref<32x32xf32, #tpu.memory_space<vmem>>, %arg10: memref<1x32xf32, #tpu.memory_space<vmem>>, %arg11: memref<8x32xf32, #tpu.memory_space<vmem>>, %arg12: memref<8x16xf32, #tpu.memory_space<vmem>>, %arg13: memref<1x2xf32, #tpu.memory_space<smem>>) attributes {dimension_semantics = [#tpu.dimension_semantics<parallel>], iteration_bounds = array<i64: 1>, scalar_prefetch = 0 : i64, scratch_operands = 0 : i64, tpu.core_type = #tpu.core_type<tc>, window_params = [{transform_indices = @transform_0, window_bounds = array<i64: 8, 16>}, {transform_indices = @transform_1, window_bounds = array<i64: 8, 16>}, {pipeline_mode = #tpu.pipeline_mode<synchronous>, transform_indices = @transform_2, window_bounds = array<i64: 16, 16>}, {pipeline_mode = #tpu.pipeline_mode<synchronous>, transform_indices = @transform_3, window_bounds = array<i64: 1, 16>}, {pipeline_mode = #tpu.pipeline_mode<synchronous>, transform_indices = @transform_4, window_bounds = array<i64: 16, 32>}, {pipeline_mode = #tpu.pipeline_mode<synchronous>, transform_indices = @transform_5, window_bounds = array<i64: 1, 32>}, {pipeline_mode = #tpu.pipeline_mode<synchronous>, transform_indices = @transform_6, window_bounds = array<i64: 32, 32>}, {pipeline_mode = #tpu.pipeline_mode<synchronous>, transform_indices = @transform_7, window_bounds = array<i64: 1, 32>}, {pipeline_mode = #tpu.pipeline_mode<synchronous>, transform_indices = @transform_8, window_bounds = array<i64: 32, 32>}, {pipeline_mode = #tpu.pipeline_mode<synchronous>, transform_indices = @transform_9, window_bounds = array<i64: 1, 32>}, {transform_indices = @transform_10, window_bounds = array<i64: 8, 32>}, {transform_indices = @transform_11, window_bounds = array<i64: 8, 16>}, {transform_indices = @transform_12, window_bounds = array<i64: 1, 2>}]} {
    %c0 = arith.constant 0 : index
    %c0_0 = arith.constant 0 : index
    %0 = vector.load %arg1[%c0, %c0_0] : memref<8x16xf32, #tpu.memory_space<vmem>>, vector<8x16xf32>
    %c0_1 = arith.constant 0 : index
    %c0_2 = arith.constant 0 : index
    %1 = vector.load %arg2[%c0_1, %c0_2] : memref<8x16xf32, #tpu.memory_space<vmem>>, vector<8x16xf32>
    %c0_3 = arith.constant 0 : index
    %c0_4 = arith.constant 0 : index
    %2 = vector.load %arg3[%c0_3, %c0_4] : memref<16x16xf32, #tpu.memory_space<vmem>>, vector<16x16xf32>
    %cst = arith.constant dense<0.000000e+00> : vector<8x16xf32>
    %3 = tpu.matmul %0, %2, %cst {dimension_numbers = #tpu.dot_dimension_numbers<[1], [0], [0], [1], [0, 0, 1, 1], [], []>} : vector<8x16xf32>, vector<16x16xf32>, vector<8x16xf32> -> vector<8x16xf32>
    %c0_5 = arith.constant 0 : index
    %c0_6 = arith.constant 0 : index
    %4 = vector.load %arg4[%c0_5, %c0_6] : memref<1x16xf32, #tpu.memory_space<vmem>>, vector<1x16xf32>
    %5 = vector.broadcast %4 : vector<1x16xf32> to vector<8x16xf32>
    %6 = arith.addf %3, %5 : vector<8x16xf32>
    %7 = arith.subf %0, %6 : vector<8x16xf32>
    %8 = arith.mulf %1, %7 : vector<8x16xf32>
    %9 = arith.addf %6, %8 : vector<8x16xf32>
    %c0_7 = arith.constant 0 : index
    %c0_8 = arith.constant 0 : index
    %10 = vector.load %arg12[%c0_7, %c0_8] : memref<8x16xf32, #tpu.memory_space<vmem>>, vector<8x16xf32>
    tpu.vector_store %arg12[%c0_7, %c0_8], %9 {strides = array<i32>} : memref<8x16xf32, #tpu.memory_space<vmem>>, vector<8x16xf32>,
    %11 = arith.subf %0, %9 : vector<8x16xf32>
    %12 = math.absf %11 : vector<8x16xf32>
    %13 = arith.mulf %12, %1 : vector<8x16xf32>
    %14 = vector.shape_cast %13 : vector<8x16xf32> to vector<1x8x16xf32>
    %cst_9 = arith.constant dense<0.000000e+00> : vector<1xf32>
    %15 = vector.multi_reduction <add>, %14, %cst_9 [1, 2] : vector<1x8x16xf32> to vector<1xf32>
    %16 = vector.shape_cast %15 : vector<1xf32> to vector<1x1x1xf32>
    %17 = vector.extract %16[0, 0, 0] : f32 from vector<1x1x1xf32>
    %c0_10 = arith.constant 0 : index
    %c0_11 = arith.constant 0 : index
    %18 = memref.load %arg13[%c0_10, %c0_11] : memref<1x2xf32, #tpu.memory_space<smem>>
    memref.store %17, %arg13[%c0_10, %c0_11] : memref<1x2xf32, #tpu.memory_space<smem>>
    %19 = vector.shape_cast %1 : vector<8x16xf32> to vector<1x8x16xf32>
    %cst_12 = arith.constant dense<0.000000e+00> : vector<1xf32>
    %20 = vector.multi_reduction <add>, %19, %cst_12 [1, 2] : vector<1x8x16xf32> to vector<1xf32>
    %21 = vector.shape_cast %20 : vector<1xf32> to vector<1x1x1xf32>
    %22 = vector.extract %21[0, 0, 0] : f32 from vector<1x1x1xf32>
    %c0_13 = arith.constant 0 : index
    %c1 = arith.constant 1 : index
    %23 = memref.load %arg13[%c0_13, %c1] : memref<1x2xf32, #tpu.memory_space<smem>>
    memref.store %22, %arg13[%c0_13, %c1] : memref<1x2xf32, #tpu.memory_space<smem>>
    %c0_14 = arith.constant 0 : index
    %c0_15 = arith.constant 0 : index
    %24 = vector.load %arg5[%c0_14, %c0_15] : memref<16x32xf32, #tpu.memory_space<vmem>>, vector<16x32xf32>
    %cst_16 = arith.constant dense<0.000000e+00> : vector<8x32xf32>
    %25 = tpu.matmul %9, %24, %cst_16 {dimension_numbers = #tpu.dot_dimension_numbers<[1], [0], [0], [1], [0, 0, 1, 1], [], []>} : vector<8x16xf32>, vector<16x32xf32>, vector<8x32xf32> -> vector<8x32xf32>
    %c0_17 = arith.constant 0 : index
    %c0_18 = arith.constant 0 : index
    %26 = vector.load %arg6[%c0_17, %c0_18] : memref<1x32xf32, #tpu.memory_space<vmem>>, vector<1x32xf32>
    %27 = vector.broadcast %26 : vector<1x32xf32> to vector<8x32xf32>
    %28 = arith.addf %25, %27 : vector<8x32xf32>
    %cst_19 = arith.constant 0.000000e+00 : f32
    %29 = vector.broadcast %cst_19 : f32 to vector<8x32xf32>
    %30 = arith.maximumf %28, %29 : vector<8x32xf32>
    %c0_20 = arith.constant 0 : index
    %c0_21 = arith.constant 0 : index
    %31 = vector.load %arg7[%c0_20, %c0_21] : memref<32x32xf32, #tpu.memory_space<vmem>>, vector<32x32xf32>
    %cst_22 = arith.constant dense<0.000000e+00> : vector<8x32xf32>
    %32 = tpu.matmul %30, %31, %cst_22 {dimension_numbers = #tpu.dot_dimension_numbers<[1], [0], [0], [1], [0, 0, 1, 1], [], []>} : vector<8x32xf32>, vector<32x32xf32>, vector<8x32xf32> -> vector<8x32xf32>
    %c0_23 = arith.constant 0 : index
    %c0_24 = arith.constant 0 : index
    %33 = vector.load %arg8[%c0_23, %c0_24] : memref<1x32xf32, #tpu.memory_space<vmem>>, vector<1x32xf32>
    %34 = vector.broadcast %33 : vector<1x32xf32> to vector<8x32xf32>
    %35 = arith.addf %32, %34 : vector<8x32xf32>
    %cst_25 = arith.constant 0.000000e+00 : f32
    %36 = vector.broadcast %cst_25 : f32 to vector<8x32xf32>
    %37 = arith.maximumf %35, %36 : vector<8x32xf32>
    %c0_26 = arith.constant 0 : index
    %c0_27 = arith.constant 0 : index
    %38 = vector.load %arg9[%c0_26, %c0_27] : memref<32x32xf32, #tpu.memory_space<vmem>>, vector<32x32xf32>
    %cst_28 = arith.constant dense<0.000000e+00> : vector<8x32xf32>
    %39 = tpu.matmul %37, %38, %cst_28 {dimension_numbers = #tpu.dot_dimension_numbers<[1], [0], [0], [1], [0, 0, 1, 1], [], []>} : vector<8x32xf32>, vector<32x32xf32>, vector<8x32xf32> -> vector<8x32xf32>
    %c0_29 = arith.constant 0 : index
    %c0_30 = arith.constant 0 : index
    %40 = vector.load %arg10[%c0_29, %c0_30] : memref<1x32xf32, #tpu.memory_space<vmem>>, vector<1x32xf32>
    %41 = vector.broadcast %40 : vector<1x32xf32> to vector<8x32xf32>
    %42 = arith.addf %39, %41 : vector<8x32xf32>
    %cst_31 = arith.constant 0.000000e+00 : f32
    %43 = vector.broadcast %cst_31 : f32 to vector<8x32xf32>
    %44 = arith.maximumf %42, %43 : vector<8x32xf32>
    %c0_32 = arith.constant 0 : index
    %c0_33 = arith.constant 0 : index
    %45 = vector.load %arg11[%c0_32, %c0_33] : memref<8x32xf32, #tpu.memory_space<vmem>>, vector<8x32xf32>
    tpu.vector_store %arg11[%c0_32, %c0_33], %44 {strides = array<i32>} : memref<8x32xf32, #tpu.memory_space<vmem>>, vector<8x32xf32>,
    return
  }
  func.func @transform_0(%arg0: i32) -> (i32, i32) {
    %c0_i32 = arith.constant 0 : i32
    %c0_i32_0 = arith.constant 0 : i32
    return %arg0, %c0_i32 : i32, i32
  }
  func.func @transform_1(%arg0: i32) -> (i32, i32) {
    %c0_i32 = arith.constant 0 : i32
    %c0_i32_0 = arith.constant 0 : i32
    return %arg0, %c0_i32 : i32, i32
  }
  func.func @transform_2(%arg0: i32) -> (i32, i32) {
    %c0_i32 = arith.constant 0 : i32
    %c0_i32_0 = arith.constant 0 : i32
    %c0_i32_1 = arith.constant 0 : i32
    return %c0_i32, %c0_i32_0 : i32, i32
  }
  func.func @transform_3(%arg0: i32) -> (i32, i32) {
    %c0_i32 = arith.constant 0 : i32
    %c0_i32_0 = arith.constant 0 : i32
    %c0_i32_1 = arith.constant 0 : i32
    return %c0_i32, %c0_i32_0 : i32, i32
  }
  func.func @transform_4(%arg0: i32) -> (i32, i32) {
    %c0_i32 = arith.constant 0 : i32
    %c0_i32_0 = arith.constant 0 : i32
    %c0_i32_1 = arith.constant 0 : i32
    return %c0_i32, %c0_i32_0 : i32, i32
  }
  func.func @transform_5(%arg0: i32) -> (i32, i32) {
    %c0_i32 = arith.constant 0 : i32
    %c0_i32_0 = arith.constant 0 : i32
    %c0_i32_1 = arith.constant 0 : i32
    return %c0_i32, %c0_i32_0 : i32, i32
  }
  func.func @transform_6(%arg0: i32) -> (i32, i32) {
    %c0_i32 = arith.constant 0 : i32
    %c0_i32_0 = arith.constant 0 : i32
    %c0_i32_1 = arith.constant 0 : i32
    return %c0_i32, %c0_i32_0 : i32, i32
  }
  func.func @transform_7(%arg0: i32) -> (i32, i32) {
    %c0_i32 = arith.constant 0 : i32
    %c0_i32_0 = arith.constant 0 : i32
    %c0_i32_1 = arith.constant 0 : i32
    return %c0_i32, %c0_i32_0 : i32, i32
  }
  func.func @transform_8(%arg0: i32) -> (i32, i32) {
    %c0_i32 = arith.constant 0 : i32
    %c0_i32_0 = arith.constant 0 : i32
    %c0_i32_1 = arith.constant 0 : i32
    return %c0_i32, %c0_i32_0 : i32, i32
  }
  func.func @transform_9(%arg0: i32) -> (i32, i32) {
    %c0_i32 = arith.constant 0 : i32
    %c0_i32_0 = arith.constant 0 : i32
    %c0_i32_1 = arith.constant 0 : i32
    return %c0_i32, %c0_i32_0 : i32, i32
  }
  func.func @transform_10(%arg0: i32) -> (i32, i32) {
    %c0_i32 = arith.constant 0 : i32
    %c0_i32_0 = arith.constant 0 : i32
    return %arg0, %c0_i32 : i32, i32
  }
  func.func @transform_11(%arg0: i32) -> (i32, i32) {
    %c0_i32 = arith.constant 0 : i32
    %c0_i32_0 = arith.constant 0 : i32
    return %arg0, %c0_i32 : i32, i32
  }
  func.func @transform_12(%arg0: i32) -> (i32, i32) {
    %c0_i32 = arith.constant 0 : i32
    %c0_i32_0 = arith.constant 0 : i32
    return %arg0, %c0_i32 : i32, i32
  }
}

</mosaic_0001>

<llo_original>
// kernel: tpu_custom_call.1
$region0: #{tpu_custom_call.1}
  #allocation0 [shape = 'u32[]', space=smem, size = 0x4, offset = 0x4, fixed_abs, tag = 'smem constant byte address 0x4 - core index']
  #allocation1 [shape = 'u32[144,128]{1,0:T(1,128)}', space=vmem, size = 0x12000, scoped, tag = 'internal scratch']
  %s0 = inlined_call_operand.hbm [shape: f32[8,16], index: 0, kind: input, shape index: {}]
  %s1 = inlined_call_operand.hbm [shape: f32[8,16], index: 1, kind: input, shape index: {}]
  %s2 = inlined_call_operand.hbm [shape: f32[16,16], index: 2, kind: input, shape index: {}]
  %s3 = inlined_call_operand.vmem [shape: f32[1,16], index: 3, kind: input, shape index: {}]
  %s4 = inlined_call_operand.hbm [shape: f32[16,32], index: 4, kind: input, shape index: {}]
  %s5 = inlined_call_operand.vmem [shape: f32[1,32], index: 5, kind: input, shape index: {}]
  %s6 = inlined_call_operand.hbm [shape: f32[32,32], index: 6, kind: input, shape index: {}]
  %s7 = inlined_call_operand.vmem [shape: f32[1,32], index: 7, kind: input, shape index: {}]
  %s8 = inlined_call_operand.hbm [shape: f32[32,32], index: 8, kind: input, shape index: {}]
  %s9 = inlined_call_operand.vmem [shape: f32[1,32], index: 9, kind: input, shape index: {}]
  %s10 = inlined_call_operand.hbm [shape: f32[8,32], index: 10, kind: output, shape index: {0}]
  %s11 = inlined_call_operand.hbm [shape: f32[8,16], index: 11, kind: output, shape index: {1}]
  %s12 = inlined_call_operand.hbm [shape: f32[1,2], index: 12, kind: output, shape index: {2}]
  %13 = xla_tuple %s10, %s11, %s12
  %s14 = sld [smem:[#allocation0]]
  $region90: #{tpu_custom_call.1} parent=0
    _
  %s16 = ssub.s32 1, %s14
  %s17 = scalar_select 0, %s16, %s14
  $region1: #{tpu_custom_call.1} parent=0
    #allocation2 [shape = 'u8[4096]{0}', space=vmem, size = 0x1000, scoped, tag = 'input window, operand 0, single buffered']
    #allocation3 [shape = 's32[1]{0}', space=sflag, size = 0x4, scoped, tag = 'scoped memory for tpu_custom_call.1']
    #allocation4 [shape = 's32[1]{0}', space=sflag, size = 0x4, scoped, tag = 'scoped memory for tpu_custom_call.1']
    #allocation5 [shape = 's32[1]{0}', space=sflag, size = 0x4, scoped, tag = 'scoped memory for tpu_custom_call.1']
    #allocation6 [shape = 'u8[4096]{0}', space=vmem, size = 0x1000, scoped, tag = 'input window, operand 1, single buffered']
    #allocation7 [shape = 's32[1]{0}', space=sflag, size = 0x4, scoped, tag = 'scoped memory for tpu_custom_call.1']
    #allocation8 [shape = 'u8[8192]{0}', space=vmem, size = 0x2000, scoped, tag = 'input window, operand 2, single buffered']
    #allocation9 [shape = 'u8[8192]{0}', space=vmem, size = 0x2000, scoped, tag = 'input window, operand 4, single buffered']
    #allocation10 [shape = 's32[1]{0}', space=sflag, size = 0x4, scoped, tag = 'scoped memory for tpu_custom_call.1']
    #allocation11 [shape = 'u8[16384]{0}', space=vmem, size = 0x4000, scoped, tag = 'input window, operand 6, single buffered']
    #allocation12 [shape = 'u8[16384]{0}', space=vmem, size = 0x4000, scoped, tag = 'input window, operand 8, single buffered']
    #allocation13 [shape = 's32[1]{0}', space=sflag, size = 0x4, scoped, tag = 'scoped memory for tpu_custom_call.1']
    #allocation14 [shape = 'u8[4096]{0}', space=vmem, size = 0x1000, scoped, tag = 'output window, operand 0, single buffered']
    #allocation15 [shape = 'u8[4096]{0}', space=vmem, size = 0x1000, scoped, tag = 'output window, operand 1, single buffered']
    #allocation16 [shape = 's32[1]{0}', space=sflag, size = 0x4, scoped, tag = 'scoped memory for tpu_custom_call.1']
    #allocation17 [shape = 'u8[512]{0}', space=smem, size = 0x200, scoped, tag = 'output window, operand 2, single buffered']
    %18 = vsyncpa [#allocation3], 0
    %19 = vsyncpa [#allocation7], 0
    %20 = vsyncpa [#allocation10], 0
    %21 = vsyncpa [#allocation13], 0
    %22 = vsyncpa [#allocation4], 0
    %23 = vsyncpa [#allocation16], 0
    %24 = vsyncpa [#allocation5], 0
    // Predicated region
    $region2: #{tpu_custom_call.1} parent=1 // pred_check
      _
    $region3: #{tpu_custom_call.1} parent=1 // pred_check_branch
      %26 = sbr.rel (0) target = $region5
    $region4: #{tpu_custom_call.1} parent=1 // pred_region
      %s28 = ssub.s32 128, 128
      %29 = vsyncadd [#allocation3], %s28
      %s31 = sshll.u32 [#allocation2], 4
      %s32 = int_to_ptr.vmem [resolvable:$true] %s31
      %34 = dma.hbm_to_vmem [thread:$0]  %s0, 128, %s32, [#allocation3]
    $region5: #{tpu_custom_call.1} parent=1 // pred_fallthru
      _
    // Predicated region
    $region6: #{tpu_custom_call.1} parent=1 // pred_check
      _
    $region7: #{tpu_custom_call.1} parent=1 // pred_check_branch
      %36 = sbr.rel (0) target = $region9
    $region8: #{tpu_custom_call.1} parent=1 // pred_region
      %s38 = ssub.s32 128, 128
      %39 = vsyncadd [#allocation7], %s38
      %s41 = sshll.u32 [#allocation6], 4
      %s42 = int_to_ptr.vmem [resolvable:$true] %s41
      %44 = dma.hbm_to_vmem [thread:$0]  %s1, 128, %s42, [#allocation7]
    $region9: #{tpu_custom_call.1} parent=1 // pred_fallthru
      _
    // Predicated region
    $region10: #{tpu_custom_call.1} parent=1 // pred_check
      _
    $region11: #{tpu_custom_call.1} parent=1 // pred_check_branch
      %46 = sbr.rel (0) target = $region13
    $region12: #{tpu_custom_call.1} parent=1 // pred_region
      %s48 = ssub.s32 256, 256
      %49 = vsyncadd [#allocation7], %s48
      %s50 = sshll.u32 [#allocation8], 4
      %s51 = int_to_ptr.vmem [resolvable:$true] %s50
      %56 = dma.hbm_to_vmem [thread:$0]  %s2, 256, %s51, [#allocation7], 128, 128, 8
    $region13: #{tpu_custom_call.1} parent=1 // pred_fallthru
      _
    // Predicated region
    $region14: #{tpu_custom_call.1} parent=1 // pred_check
      _
    $region15: #{tpu_custom_call.1} parent=1 // pred_check_branch
      %58 = sbr.rel (0) target = $region17
    $region16: #{tpu_custom_call.1} parent=1 // pred_region
      _
    $region17: #{tpu_custom_call.1} parent=1 // pred_fallthru
      _
    // Predicated region
    $region18: #{tpu_custom_call.1} parent=1 // pred_check
      _
    $region19: #{tpu_custom_call.1} parent=1 // pred_check_branch
      %60 = sbr.rel (0) target = $region21
    $region20: #{tpu_custom_call.1} parent=1 // pred_region
      %s62 = ssub.s32 256, 256
      %63 = vsyncadd [#allocation10], %s62
      %s64 = sshll.u32 [#allocation9], 4
      %s65 = int_to_ptr.vmem [resolvable:$true] %s64
      %70 = dma.hbm_to_vmem [thread:$0]  %s4, 256, %s65, [#allocation10], 128, 128, 8
    $region21: #{tpu_custom_call.1} parent=1 // pred_fallthru
      _
    // Predicated region
    $region22: #{tpu_custom_call.1} parent=1 // pred_check
      _
    $region23: #{tpu_custom_call.1} parent=1 // pred_check_branch
      %72 = sbr.rel (0) target = $region25
    $region24: #{tpu_custom_call.1} parent=1 // pred_region
      _
    $region25: #{tpu_custom_call.1} parent=1 // pred_fallthru
      _
    // Predicated region
    $region26: #{tpu_custom_call.1} parent=1 // pred_check
      _
    $region27: #{tpu_custom_call.1} parent=1 // pred_check_branch
      %74 = sbr.rel (0) target = $region29
    $region28: #{tpu_custom_call.1} parent=1 // pred_region
      %s76 = ssub.s32 512, 512
      %77 = vsyncadd [#allocation10], %s76
      %s78 = sshll.u32 [#allocation11], 4
      %s79 = int_to_ptr.vmem [resolvable:$true] %s78
      %84 = dma.hbm_to_vmem [thread:$0]  %s6, 512, %s79, [#allocation10], 128, 128, 8
    $region29: #{tpu_custom_call.1} parent=1 // pred_fallthru
      _
    // Predicated region
    $region30: #{tpu_custom_call.1} parent=1 // pred_check
      _
    $region31: #{tpu_custom_call.1} parent=1 // pred_check_branch
      %86 = sbr.rel (0) target = $region33
    $region32: #{tpu_custom_call.1} parent=1 // pred_region
      _
    $region33: #{tpu_custom_call.1} parent=1 // pred_fallthru
      _
    // Predicated region
    $region34: #{tpu_custom_call.1} parent=1 // pred_check
      _
    $region35: #{tpu_custom_call.1} parent=1 // pred_check_branch
      %88 = sbr.rel (0) target = $region37
    $region36: #{tpu_custom_call.1} parent=1 // pred_region
      %s90 = ssub.s32 512, 512
      %91 = vsyncadd [#allocation13], %s90
      %s92 = sshll.u32 [#allocation12], 4
      %s93 = int_to_ptr.vmem [resolvable:$true] %s92
      %98 = dma.hbm_to_vmem [thread:$0]  %s8, 512, %s93, [#allocation13], 128, 128, 8
    $region37: #{tpu_custom_call.1} parent=1 // pred_fallthru
      _
    // Predicated region
    $region38: #{tpu_custom_call.1} parent=1 // pred_check
      _
    $region39: #{tpu_custom_call.1} parent=1 // pred_check_branch
      %100 = sbr.rel (0) target = $region41
    $region40: #{tpu_custom_call.1} parent=1 // pred_region
      _
    $region41: #{tpu_custom_call.1} parent=1 // pred_fallthru
      _
    // Predicated region
    $region42: #{tpu_custom_call.1} parent=1 // pred_check
      _
    $region43: #{tpu_custom_call.1} parent=1 // pred_check_branch
      %102 = sbr.rel (0) target = $region45
    $region44: #{tpu_custom_call.1} parent=1 // pred_region
      %103 = dma.done [#allocation3], 128
    $region45: #{tpu_custom_call.1} parent=1 // pred_fallthru
      _
    // Predicated region
    $region46: #{tpu_custom_call.1} parent=1 // pred_check
      _
    $region47: #{tpu_custom_call.1} parent=1 // pred_check_branch
      %105 = sbr.rel (0) target = $region49
    $region48: #{tpu_custom_call.1} parent=1 // pred_region
      %106 = dma.done [#allocation7], 128
    $region49: #{tpu_custom_call.1} parent=1 // pred_fallthru
      _
    // Predicated region
    $region50: #{tpu_custom_call.1} parent=1 // pred_check
      _
    $region51: #{tpu_custom_call.1} parent=1 // pred_check_branch
      %108 = sbr.rel (0) target = $region53
    $region52: #{tpu_custom_call.1} parent=1 // pred_region
      %109 = dma.done [#allocation7], 256
    $region53: #{tpu_custom_call.1} parent=1 // pred_fallthru
      _
    // Predicated region
    $region54: #{tpu_custom_call.1} parent=1 // pred_check
      _
    $region55: #{tpu_custom_call.1} parent=1 // pred_check_branch
      %111 = sbr.rel (0) target = $region57
    $region56: #{tpu_custom_call.1} parent=1 // pred_region
      %112 = dma.done [#allocation10], 256
    $region57: #{tpu_custom_call.1} parent=1 // pred_fallthru
      _
    // Predicated region
    $region58: #{tpu_custom_call.1} parent=1 // pred_check
      _
    $region59: #{tpu_custom_call.1} parent=1 // pred_check_branch
      %114 = sbr.rel (0) target = $region61
    $region60: #{tpu_custom_call.1} parent=1 // pred_region
      %115 = dma.done [#allocation10], 512
    $region61: #{tpu_custom_call.1} parent=1 // pred_fallthru
      _
    // Predicated region
    $region62: #{tpu_custom_call.1} parent=1 // pred_check
      _
    $region63: #{tpu_custom_call.1} parent=1 // pred_check_branch
      %117 = sbr.rel (0) target = $region65
    $region64: #{tpu_custom_call.1} parent=1 // pred_region
      %118 = dma.done [#allocation13], 512
    $region65: #{tpu_custom_call.1} parent=1 // pred_fallthru
      _
    %v119 = vld [vmem:[#allocation2] sm:$0xff]
    %v120 = vld [vmem:[#allocation6] sm:$0xff]
    %v121 = vld [vmem:[#allocation8] sm:$0xff]
    %v122 = vld [vmem:[#allocation8 + $0x8] sm:$0xff]
    %v123 = vld [vmem:[%s3] sm:$0x1]
    %v125 = vlaneseq
    %v126 = vshrl.u32 %v125, 7
    %v127 = vsub.s32 0, %v126
    %v128 = vrot.slane %v123, %v127
    %vm130 = vcmask 130048
    %v132 = vsel %vm130, %v119, 0
    %134 = vmatprep.subr.mxu0 0.0
    %135 = vmatpush1.msra.mxu0 0.0
    %136 = vmatprep.subr.mxu0 0.0
    %137 = vmatpush1.msra.mxu0 0.0
    %138 = vmatprep.subr.mxu0 0.0
    %139 = vmatpush1.msra.mxu0 0.0
    %140 = vmatprep.subr.mxu0 0.0
    %141 = vmatpush1.msra.mxu0 0.0
    %142 = vmatprep.subr.mxu0 0.0
    %143 = vmatpush1.msra.mxu0 0.0
    %144 = vmatprep.subr.mxu0 0.0
    %145 = vmatpush1.msra.mxu0 0.0
    %146 = vmatprep.subr.mxu0 0.0
    %147 = vmatpush1.msra.mxu0 0.0
    %148 = vmatprep.subr.mxu0 0.0
    %149 = vmatpush1.msra.mxu0 0.0
    %150 = vmatprep.subr.mxu0 0.0
    %151 = vmatpush1.msra.mxu0 0.0
    %152 = vmatprep.subr.mxu0 0.0
    %153 = vmatpush1.msra.mxu0 0.0
    %154 = vmatprep.subr.mxu0 0.0
    %155 = vmatpush1.msra.mxu0 0.0
    %156 = vmatprep.subr.mxu0 0.0
    %157 = vmatpush1.msra.mxu0 0.0
    %158 = vmatprep.subr.mxu0 0.0
    %159 = vmatpush1.msra.mxu0 0.0
    %160 = vmatprep.subr.mxu0 0.0
    %161 = vmatpush1.msra.mxu0 0.0
    %162 = vmatprep.subr.mxu0 0.0
    %163 = vmatpush1.msra.mxu0 %v122
    %164 = vmatprep.subr.mxu0 0.0
    %165 = vmatpush1.msra.mxu0 %v121
    %166 = vmatprep.subr.mxu0 0.0
    %167 = vmatpush2.msra.mxu0 0.0
    %168 = vmatprep.subr.mxu0 0.0
    %169 = vmatpush2.msra.mxu0 0.0
    %170 = vmatprep.subr.mxu0 0.0
    %171 = vmatpush2.msra.mxu0 0.0
    %172 = vmatprep.subr.mxu0 0.0
    %173 = vmatpush2.msra.mxu0 0.0
    %174 = vmatprep.subr.mxu0 0.0
    %175 = vmatpush2.msra.mxu0 0.0
    %176 = vmatprep.subr.mxu0 0.0
    %177 = vmatpush2.msra.mxu0 0.0
    %178 = vmatprep.subr.mxu0 0.0
    %179 = vmatpush2.msra.mxu0 0.0
    %180 = vmatprep.subr.mxu0 0.0
    %181 = vmatpush2.msra.mxu0 0.0
    %182 = vmatprep.subr.mxu0 0.0
    %183 = vmatpush2.msra.mxu0 0.0
    %184 = vmatprep.subr.mxu0 0.0
    %185 = vmatpush2.msra.mxu0 0.0
    %186 = vmatprep.subr.mxu0 0.0
    %187 = vmatpush2.msra.mxu0 0.0
    %188 = vmatprep.subr.mxu0 0.0
    %189 = vmatpush2.msra.mxu0 0.0
    %190 = vmatprep.subr.mxu0 0.0
    %191 = vmatpush2.msra.mxu0 0.0
    %192 = vmatprep.subr.mxu0 0.0
    %193 = vmatpush2.msra.mxu0 0.0
    %194 = vmatprep.subr.mxu0 0.0
    %195 = vmatpush2.msra.mxu0 0.0
    %196 = vmatprep.subr.mxu0 0.0
    %197 = vmatpush2.msra.mxu0 0.0
    %198 = vmatprep.mubr.f32.mxu0 0.0
    %199 = vmatmul.mubr.f32.gmra.mxu0 %v132
    %v200 = vpop.f32.mrf.mxu0
    %v201 = vadd.f32 %v128, %v200
    %v202 = vpop.f32.mrf.mxu0
    %203 = vdwg.mxu0
    %v204 = vsub.f32 %v119, %v201
    %v205 = vmul.f32 %v120, %v204
    %v206 = vadd.f32 %v201, %v205
    %207 = vst.msk [vmem:[#allocation15] sm:$0xff] %vm130, %v206
    %v208 = vsub.f32 %v119, %v206
    %v209 = vand.u32 2147483647, %v208
    %v210 = vmul.f32 %v209, %v120
    %v211 = vsel %vm130, %v210, 0.0
    %212 = vadd.xlane.f32.xlu0 %v211
    %v213 = vpop.xlane.xlu0 %212
    %v214 = vrot.slane %v213, 4
    %v215 = vadd.f32 %v213, %v214
    %v216 = vrot.slane %v215, 2
    %v217 = vadd.f32 %v215, %v216
    %v218 = vrot.slane %v217, 1
    %v219 = vadd.f32 %v217, %v218
    %s220 = vtos %v219
    %s221 = scalar_lea.smem [#allocation17], 0
    %222 = sst [smem:[%s221]] %s220
    %v223 = vsel %vm130, %v120, 0.0
    %224 = vadd.xlane.f32.xlu0 %v223
    %v225 = vpop.xlane.xlu0 %224
    %v226 = vrot.slane %v225, 4
    %v227 = vadd.f32 %v225, %v226
    %v228 = vrot.slane %v227, 2
    %v229 = vadd.f32 %v227, %v228
    %v230 = vrot.slane %v229, 1
    %v231 = vadd.f32 %v229, %v230
    %s232 = vtos %v231
    %s233 = scalar_lea.smem [#allocation17], 1
    %234 = sst [smem:[%s233]] %s232
    %v235 = vld [vmem:[#allocation9] sm:$0xff]
    %v236 = vld [vmem:[#allocation9 + $0x8] sm:$0xff]
    %v237 = vld [vmem:[%s5] sm:$0x1]
    %v239 = vlaneseq
    %v240 = vshrl.u32 %v239, 7
    %v241 = vsub.s32 0, %v240
    %v242 = vrot.slane %v237, %v241
    %v245 = vsel %vm130, %v206, 0
    %247 = vmatprep.subr.mxu0 0.0
    %248 = vmatpush1.msra.mxu0 0.0
    %249 = vmatprep.subr.mxu0 0.0
    %250 = vmatpush1.msra.mxu0 0.0
    %251 = vmatprep.subr.mxu0 0.0
    %252 = vmatpush1.msra.mxu0 0.0
    %253 = vmatprep.subr.mxu0 0.0
    %254 = vmatpush1.msra.mxu0 0.0
    %255 = vmatprep.subr.mxu0 0.0
    %256 = vmatpush1.msra.mxu0 0.0
    %257 = vmatprep.subr.mxu0 0.0
    %258 = vmatpush1.msra.mxu0 0.0
    %259 = vmatprep.subr.mxu0 0.0
    %260 = vmatpush1.msra.mxu0 0.0
    %261 = vmatprep.subr.mxu0 0.0
    %262 = vmatpush1.msra.mxu0 0.0
    %263 = vmatprep.subr.mxu0 0.0
    %264 = vmatpush1.msra.mxu0 0.0
    %265 = vmatprep.subr.mxu0 0.0
    %266 = vmatpush1.msra.mxu0 0.0
    %267 = vmatprep.subr.mxu0 0.0
    %268 = vmatpush1.msra.mxu0 0.0
    %269 = vmatprep.subr.mxu0 0.0
    %270 = vmatpush1.msra.mxu0 0.0
    %271 = vmatprep.subr.mxu0 0.0
    %272 = vmatpush1.msra.mxu0 0.0
    %273 = vmatprep.subr.mxu0 0.0
    %274 = vmatpush1.msra.mxu0 0.0
    %275 = vmatprep.subr.mxu0 0.0
    %276 = vmatpush1.msra.mxu0 %v236
    %277 = vmatprep.subr.mxu0 0.0
    %278 = vmatpush1.msra.mxu0 %v235
    %279 = vmatprep.subr.mxu0 0.0
    %280 = vmatpush2.msra.mxu0 0.0
    %281 = vmatprep.subr.mxu0 0.0
    %282 = vmatpush2.msra.mxu0 0.0
    %283 = vmatprep.subr.mxu0 0.0
    %284 = vmatpush2.msra.mxu0 0.0
    %285 = vmatprep.subr.mxu0 0.0
    %286 = vmatpush2.msra.mxu0 0.0
    %287 = vmatprep.subr.mxu0 0.0
    %288 = vmatpush2.msra.mxu0 0.0
    %289 = vmatprep.subr.mxu0 0.0
    %290 = vmatpush2.msra.mxu0 0.0
    %291 = vmatprep.subr.mxu0 0.0
    %292 = vmatpush2.msra.mxu0 0.0
    %293 = vmatprep.subr.mxu0 0.0
    %294 = vmatpush2.msra.mxu0 0.0
    %295 = vmatprep.subr.mxu0 0.0
    %296 = vmatpush2.msra.mxu0 0.0
    %297 = vmatprep.subr.mxu0 0.0
    %298 = vmatpush2.msra.mxu0 0.0
    %299 = vmatprep.subr.mxu0 0.0
    %300 = vmatpush2.msra.mxu0 0.0
    %301 = vmatprep.subr.mxu0 0.0
    %302 = vmatpush2.msra.mxu0 0.0
    %303 = vmatprep.subr.mxu0 0.0
    %304 = vmatpush2.msra.mxu0 0.0
    %305 = vmatprep.subr.mxu0 0.0
    %306 = vmatpush2.msra.mxu0 0.0
    %307 = vmatprep.subr.mxu0 0.0
    %308 = vmatpush2.msra.mxu0 0.0
    %309 = vmatprep.subr.mxu0 0.0
    %310 = vmatpush2.msra.mxu0 0.0
    %311 = vmatprep.mubr.f32.mxu0 0.0
    %312 = vmatmul.mubr.f32.gmra.mxu0 %v245
    %v313 = vpop.f32.mrf.mxu0
    %v314 = vadd.f32 %v242, %v313
    %v315 = vpop.f32.mrf.mxu0
    %316 = vdwg.mxu0
    %v317 = vmax.f32 %v314, 0.0
    %v318 = vld [vmem:[#allocation11] sm:$0xff]
    %v319 = vld [vmem:[#allocation11 + $0x8] sm:$0xff]
    %v320 = vld [vmem:[#allocation11 + $0x10] sm:$0xff]
    %v321 = vld [vmem:[#allocation11 + $0x18] sm:$0xff]
    %v322 = vld [vmem:[%s7] sm:$0x1]
    %v324 = vlaneseq
    %v325 = vshrl.u32 %v324, 7
    %v326 = vsub.s32 0, %v325
    %v327 = vrot.slane %v322, %v326
    %vm329 = vcmask 261120
    %v331 = vsel %vm329, %v317, 0
    %333 = vmatprep.subr.mxu0 0.0
    %334 = vmatpush1.msra.mxu0 0.0
    %335 = vmatprep.subr.mxu0 0.0
    %336 = vmatpush1.msra.mxu0 0.0
    %337 = vmatprep.subr.mxu0 0.0
    %338 = vmatpush1.msra.mxu0 0.0
    %339 = vmatprep.subr.mxu0 0.0
    %340 = vmatpush1.msra.mxu0 0.0
    %341 = vmatprep.subr.mxu0 0.0
    %342 = vmatpush1.msra.mxu0 0.0
    %343 = vmatprep.subr.mxu0 0.0
    %344 = vmatpush1.msra.mxu0 0.0
    %345 = vmatprep.subr.mxu0 0.0
    %346 = vmatpush1.msra.mxu0 0.0
    %347 = vmatprep.subr.mxu0 0.0
    %348 = vmatpush1.msra.mxu0 0.0
    %349 = vmatprep.subr.mxu0 0.0
    %350 = vmatpush1.msra.mxu0 0.0
    %351 = vmatprep.subr.mxu0 0.0
    %352 = vmatpush1.msra.mxu0 0.0
    %353 = vmatprep.subr.mxu0 0.0
    %354 = vmatpush1.msra.mxu0 0.0
    %355 = vmatprep.subr.mxu0 0.0
    %356 = vmatpush1.msra.mxu0 0.0
    %357 = vmatprep.subr.mxu0 0.0
    %358 = vmatpush1.msra.mxu0 %v321
    %359 = vmatprep.subr.mxu0 0.0
    %360 = vmatpush1.msra.mxu0 %v320
    %361 = vmatprep.subr.mxu0 0.0
    %362 = vmatpush1.msra.mxu0 %v319
    %363 = vmatprep.subr.mxu0 0.0
    %364 = vmatpush1.msra.mxu0 %v318
    %365 = vmatprep.subr.mxu0 0.0
    %366 = vmatpush2.msra.mxu0 0.0
    %367 = vmatprep.subr.mxu0 0.0
    %368 = vmatpush2.msra.mxu0 0.0
    %369 = vmatprep.subr.mxu0 0.0
    %370 = vmatpush2.msra.mxu0 0.0
    %371 = vmatprep.subr.mxu0 0.0
    %372 = vmatpush2.msra.mxu0 0.0
    %373 = vmatprep.subr.mxu0 0.0
    %374 = vmatpush2.msra.mxu0 0.0
    %375 = vmatprep.subr.mxu0 0.0
    %376 = vmatpush2.msra.mxu0 0.0
    %377 = vmatprep.subr.mxu0 0.0
    %378 = vmatpush2.msra.mxu0 0.0
    %379 = vmatprep.subr.mxu0 0.0
    %380 = vmatpush2.msra.mxu0 0.0
    %381 = vmatprep.subr.mxu0 0.0
    %382 = vmatpush2.msra.mxu0 0.0
    %383 = vmatprep.subr.mxu0 0.0
    %384 = vmatpush2.msra.mxu0 0.0
    %385 = vmatprep.subr.mxu0 0.0
    %386 = vmatpush2.msra.mxu0 0.0
    %387 = vmatprep.subr.mxu0 0.0
    %388 = vmatpush2.msra.mxu0 0.0
    %389 = vmatprep.subr.mxu0 0.0
    %390 = vmatpush2.msra.mxu0 0.0
    %391 = vmatprep.subr.mxu0 0.0
    %392 = vmatpush2.msra.mxu0 0.0
    %393 = vmatprep.subr.mxu0 0.0
    %394 = vmatpush2.msra.mxu0 0.0
    %395 = vmatprep.subr.mxu0 0.0
    %396 = vmatpush2.msra.mxu0 0.0
    %397 = vmatprep.mubr.f32.mxu0 0.0
    %398 = vmatmul.mubr.f32.gmra.mxu0 %v331
    %v399 = vpop.f32.mrf.mxu0
    %v400 = vadd.f32 %v327, %v399
    %v401 = vpop.f32.mrf.mxu0
    %402 = vdwg.mxu0
    %v403 = vmax.f32 %v400, 0.0
    %v404 = vld [vmem:[#allocation12] sm:$0xff]
    %v405 = vld [vmem:[#allocation12 + $0x8] sm:$0xff]
    %v406 = vld [vmem:[#allocation12 + $0x10] sm:$0xff]
    %v407 = vld [vmem:[#allocation12 + $0x18] sm:$0xff]
    %v408 = vld [vmem:[%s9] sm:$0x1]
    %v410 = vlaneseq
    %v411 = vshrl.u32 %v410, 7
    %v412 = vsub.s32 0, %v411
    %v413 = vrot.slane %v408, %v412
    %v416 = vsel %vm329, %v403, 0
    %418 = vmatprep.subr.mxu0 0.0
    %419 = vmatpush1.msra.mxu0 0.0
    %420 = vmatprep.subr.mxu0 0.0
    %421 = vmatpush1.msra.mxu0 0.0
    %422 = vmatprep.subr.mxu0 0.0
    %423 = vmatpush1.msra.mxu0 0.0
    %424 = vmatprep.subr.mxu0 0.0
    %425 = vmatpush1.msra.mxu0 0.0
    %426 = vmatprep.subr.mxu0 0.0
    %427 = vmatpush1.msra.mxu0 0.0
    %428 = vmatprep.subr.mxu0 0.0
    %429 = vmatpush1.msra.mxu0 0.0
    %430 = vmatprep.subr.mxu0 0.0
    %431 = vmatpush1.msra.mxu0 0.0
    %432 = vmatprep.subr.mxu0 0.0
    %433 = vmatpush1.msra.mxu0 0.0
    %434 = vmatprep.subr.mxu0 0.0
    %435 = vmatpush1.msra.mxu0 0.0
    %436 = vmatprep.subr.mxu0 0.0
    %437 = vmatpush1.msra.mxu0 0.0
    %438 = vmatprep.subr.mxu0 0.0
    %439 = vmatpush1.msra.mxu0 0.0
    %440 = vmatprep.subr.mxu0 0.0
    %441 = vmatpush1.msra.mxu0 0.0
    %442 = vmatprep.subr.mxu0 0.0
    %443 = vmatpush1.msra.mxu0 %v407
    %444 = vmatprep.subr.mxu0 0.0
    %445 = vmatpush1.msra.mxu0 %v406
    %446 = vmatprep.subr.mxu0 0.0
    %447 = vmatpush1.msra.mxu0 %v405
    %448 = vmatprep.subr.mxu0 0.0
    %449 = vmatpush1.msra.mxu0 %v404
    %450 = vmatprep.subr.mxu0 0.0
    %451 = vmatpush2.msra.mxu0 0.0
    %452 = vmatprep.subr.mxu0 0.0
    %453 = vmatpush2.msra.mxu0 0.0
    %454 = vmatprep.subr.mxu0 0.0
    %455 = vmatpush2.msra.mxu0 0.0
    %456 = vmatprep.subr.mxu0 0.0
    %457 = vmatpush2.msra.mxu0 0.0
    %458 = vmatprep.subr.mxu0 0.0
    %459 = vmatpush2.msra.mxu0 0.0
    %460 = vmatprep.subr.mxu0 0.0
    %461 = vmatpush2.msra.mxu0 0.0
    %462 = vmatprep.subr.mxu0 0.0
    %463 = vmatpush2.msra.mxu0 0.0
    %464 = vmatprep.subr.mxu0 0.0
    %465 = vmatpush2.msra.mxu0 0.0
    %466 = vmatprep.subr.mxu0 0.0
    %467 = vmatpush2.msra.mxu0 0.0
    %468 = vmatprep.subr.mxu0 0.0
    %469 = vmatpush2.msra.mxu0 0.0
    %470 = vmatprep.subr.mxu0 0.0
    %471 = vmatpush2.msra.mxu0 0.0
    %472 = vmatprep.subr.mxu0 0.0
    %473 = vmatpush2.msra.mxu0 0.0
    %474 = vmatprep.subr.mxu0 0.0
    %475 = vmatpush2.msra.mxu0 0.0
    %476 = vmatprep.subr.mxu0 0.0
    %477 = vmatpush2.msra.mxu0 0.0
    %478 = vmatprep.subr.mxu0 0.0
    %479 = vmatpush2.msra.mxu0 0.0
    %480 = vmatprep.subr.mxu0 0.0
    %481 = vmatpush2.msra.mxu0 0.0
    %482 = vmatprep.mubr.f32.mxu0 0.0
    %483 = vmatmul.mubr.f32.gmra.mxu0 %v416
    %v484 = vpop.f32.mrf.mxu0
    %v485 = vadd.f32 %v413, %v484
    %v486 = vpop.f32.mrf.mxu0
    %487 = vdwg.mxu0
    %v488 = vmax.f32 %v485, 0.0
    %489 = vst.msk [vmem:[#allocation14] sm:$0xff] %vm329, %v488
    // Predicated region
    $region66: #{tpu_custom_call.1} parent=1 // pred_check
      _
    $region67: #{tpu_custom_call.1} parent=1 // pred_check_branch
      %491 = sbr.rel (0) target = $region69
    $region68: #{tpu_custom_call.1} parent=1 // pred_region
      %s493 = ssub.s32 128, 128
      %494 = vsyncadd [#allocation4], %s493
      %s496 = sshll.u32 [#allocation14], 4
      %s497 = int_to_ptr.vmem [resolvable:$true] %s496
      %499 = dma.vmem_to_hbm [thread:$0]  %s497, 128, %s10, [#allocation4]
    $region69: #{tpu_custom_call.1} parent=1 // pred_fallthru
      _
    // Predicated region
    $region70: #{tpu_custom_call.1} parent=1 // pred_check
      _
    $region71: #{tpu_custom_call.1} parent=1 // pred_check_branch
      %501 = sbr.rel (0) target = $region73
    $region72: #{tpu_custom_call.1} parent=1 // pred_region
      %s503 = ssub.s32 128, 128
      %504 = vsyncadd [#allocation16], %s503
      %s506 = sshll.u32 [#allocation15], 4
      %s507 = int_to_ptr.vmem [resolvable:$true] %s506
      %509 = dma.vmem_to_hbm [thread:$0]  %s507, 128, %s11, [#allocation16]
    $region73: #{tpu_custom_call.1} parent=1 // pred_fallthru
      _
    // Predicated region
    $region74: #{tpu_custom_call.1} parent=1 // pred_check
      _
    $region75: #{tpu_custom_call.1} parent=1 // pred_check_branch
      %511 = sbr.rel (0) target = $region77
    $region76: #{tpu_custom_call.1} parent=1 // pred_region
      %s513 = ssub.s32 16, 16
      %514 = vsyncadd [#allocation5], %s513
      %517 = dma.smem_to_hbm [#allocation17], 16, %s12, [#allocation5]
    $region77: #{tpu_custom_call.1} parent=1 // pred_fallthru
      _
    // Predicated region
    $region78: #{tpu_custom_call.1} parent=1 // pred_check
      _
    $region79: #{tpu_custom_call.1} parent=1 // pred_check_branch
      %519 = sbr.rel (0) target = $region81
    $region80: #{tpu_custom_call.1} parent=1 // pred_region
      %520 = dma.done [#allocation4], 128
    $region81: #{tpu_custom_call.1} parent=1 // pred_fallthru
      _
    // Predicated region
    $region82: #{tpu_custom_call.1} parent=1 // pred_check
      _
    $region83: #{tpu_custom_call.1} parent=1 // pred_check_branch
      %522 = sbr.rel (0) target = $region85
    $region84: #{tpu_custom_call.1} parent=1 // pred_region
      %523 = dma.done [#allocation16], 128
    $region85: #{tpu_custom_call.1} parent=1 // pred_fallthru
      _
    // Predicated region
    $region86: #{tpu_custom_call.1} parent=1 // pred_check
      _
    $region87: #{tpu_custom_call.1} parent=1 // pred_check_branch
      %525 = sbr.rel (0) target = $region89
    $region88: #{tpu_custom_call.1} parent=1 // pred_region
      %526 = dma.done [#allocation5], 16
    $region89: #{tpu_custom_call.1} parent=1 // pred_fallthru
      _
    %527 = sfence
    %528 = vsyncpa [#allocation3], 1
    %529 = vsyncpa [#allocation7], 1
    %530 = vsyncpa [#allocation10], 1
    %531 = vsyncpa [#allocation13], 1
    %532 = vsyncpa [#allocation4], 1
    %533 = vsyncpa [#allocation16], 1
    %534 = vsyncpa [#allocation5], 1

</llo_original>
